<compile_context>
chip_gen: v7x
topology: tpu7x:2x2x1
jax: 0.10.0
libtpu: 0.0.40
codegen_flags: <defaults>
</compile_context>

<pallas_src>
import numpy as np
import jax
import jax.numpy as jnp
from jax import lax
from jax.experimental import pallas as pl
from jax.experimental.pallas import tpu as pltpu


def _cdiv(a: int, b: int) -> int:
    return -(-a // b)


def _sublane_tile(dtype) -> int:
    # Native sublane tile for the dtype's packing: f32 -> 8, bf16 -> 16, i8 -> 32.
    itemsize = jnp.dtype(dtype).itemsize
    if itemsize >= 4:
        return 8
    if itemsize == 2:
        return 16
    return 32


def _make_occlusion_kernel(r0, r1, c0, c1, rb_start, cb_start, tr, tc):
    """Kernel with statically-baked window bounds and block-origin offsets."""

    def kernel(x_ref, o_ref):
        j = pl.program_id(1)          # row-tile index within the window cover
        k = pl.program_id(2)          # col-tile index within the window cover
        row_base = (rb_start + j) * tr
        col_base = (cb_start + k) * tc

        # 2-D mask shared across the channels of this block.
        rows = row_base + lax.broadcasted_iota(jnp.int32, (tr, tc), 0)
        cols = col_base + lax.broadcasted_iota(jnp.int32, (tr, tc), 1)
        # Two unsigned range checks instead of four signed compares.
        in_rows = (rows - r0).astype(jnp.uint32) < jnp.uint32(r1 - r0)
        in_cols = (cols - c0).astype(jnp.uint32) < jnp.uint32(c1 - c0)
        mask = (in_rows & in_cols)[None, :, :]

        x = x_ref[...]                # (tC, tr, tc) block
        o_ref[...] = jnp.where(mask, jnp.zeros((), x.dtype), x)

    return kernel


class OcclusionTransform:
    """JAX/Pallas port of the PyTorch OcclusionTransform module."""

    def __init__(self, width: int = 5):
        if width % 2 != 1:
            raise Exception("Width must be an odd number")
        self.width = width

    def __call__(self, tensor: jax.Array, loc) -> jax.Array:
        width = self.width
        diff = (width - 1) / 2
        first_dim, second_dim = loc[0], loc[1]
        # NOTE: mirrors the reference exactly — bounds are computed from
        # tensor.shape[1] of the ORIGINAL tensor (before the 2-D -> 3-D
        # reshape) and shape[1] clips BOTH dims (inherited reference quirk;
        # for non-square H != W this is intentional fidelity, not a bug).
        r0 = int(np.round(max(0, first_dim - diff)))
        c0 = int(np.round(max(0, second_dim - diff)))
        r1 = int(np.round(min(tensor.shape[1], first_dim + diff + 1)))
        c1 = int(np.round(min(tensor.shape[1], second_dim + diff + 1)))

        if tensor.ndim < 3:
            tensor = tensor.reshape((-1,) + tensor.shape)
        # TODO(synk): tensors with ndim > 3 (reference slices dims 1/2 and keeps
        # trailing dims) are not handled by this kernel.

        C, H, W = tensor.shape
        dtype = tensor.dtype
        itemsize = jnp.dtype(dtype).itemsize

        # Effective slice-semantics window after clipping to real extents.
        r1_eff = min(r1, H)
        c1_eff = min(c1, W)
        if r0 >= r1_eff or c0 >= c1_eff or C == 0:
            # Empty window: nothing to zero.  JAX arrays are immutable, so
            # returning the input is equivalent to the reference's deepcopy.
            return tensor

        # Tile sizes respecting TPU layout constraints:
        #   rows: native sublane tile (or full H if smaller),
        #   cols: 128 lanes (or full W if smaller).
        tr = _sublane_tile(dtype)
        tr = tr if H >= tr else H
        tc = 128 if W >= 128 else W

        # Channel tile: amortize per-grid-step overhead while keeping the
        # four pipeline buffers (2 in + 2 out) comfortably within scoped VMEM
        # (block capped at ~1 MiB -> <= ~4 MiB of buffers).
        tC = max(1, min(C, (1 << 20) // (tr * tc * itemsize)))

        # Block-aligned cover of the occlusion window (static Python ints).
        rb_start, rb_end = r0 // tr, _cdiv(r1_eff, tr)
        cb_start, cb_end = c0 // tc, _cdiv(c1_eff, tc)
        n_rb = rb_end - rb_start
        n_cb = cb_end - cb_start
        n_cblk = _cdiv(C, tC)

        kernel = _make_occlusion_kernel(
            r0, r1_eff, c0, c1_eff, rb_start, cb_start, tr, tc
        )

        index_map = lambda c, j, k: (c, rb_start + j, cb_start + k)

        out = pl.pallas_call(
            kernel,
            out_shape=jax.ShapeDtypeStruct((C, H, W), dtype),
            grid=(n_cblk, n_rb, n_cb),
            in_specs=[pl.BlockSpec((tC, tr, tc), index_map)],
            out_specs=pl.BlockSpec((tC, tr, tc), index_map),
            # Tensor aliases the output: untouched blocks keep input values,
            # so only the window-covering blocks are ever DMA'd.
            input_output_aliases={0: 0},
            compiler_params=pltpu.CompilerParams(
                dimension_semantics=("parallel", "parallel", "parallel")
            ),
        )(tensor)
        return out


def _reference_numpy(tensor: np.ndarray, loc, width: int) -> np.ndarray:
    tensor = tensor.copy()
    diff = (width - 1) / 2
    first_dim, second_dim = loc[0], loc[1]
    min_val_first = int(np.round(max(0, first_dim - diff)))
    min_val_second = int(np.round(max(0, second_dim - diff)))
    max_val_first = int(np.round(min(tensor.shape[1], first_dim + diff + 1)))
    max_val_second = int(np.round(min(tensor.shape[1], second_dim + diff + 1)))
    if tensor.ndim < 3:
        tensor = tensor.reshape((-1,) + tensor.shape)
    tensor[:, min_val_first:max_val_first, min_val_second:max_val_second] = 0
    return tensor


if __name__ == "__main__":
    transform = OcclusionTransform(width=5)

    # 3-D input, window clipped at the right edge.
    C, H, W = 4, 16, 16
    x = jax.random.normal(jax.random.PRNGKey(0), (C, H, W), dtype=jnp.float32)
    x_np = np.asarray(x)
    loc = (3, 14)
    y = jax.block_until_ready(transform(x, loc))
    np.testing.assert_allclose(np.asarray(y), _reference_numpy(x_np, loc, 5),
                               rtol=0, atol=0)

    # 2-D input path (reshaped to (1, H, W) like the reference).
    x2d = jax.random.normal(jax.random.PRNGKey(1), (H, W), dtype=jnp.float32)
    x2d_np = np.asarray(x2d)
    y2d = jax.block_until_ready(transform(x2d, (0, 7)))
    np.testing.assert_allclose(np.asarray(y2d), _reference_numpy(x2d_np, (0, 7), 5),
                               rtol=0, atol=0)

    # Larger image: exercises the 128-lane column tile; only ~1 (8,128) block
    # per channel-tile is DMA'd instead of the whole 256x256 image.
    xl = jax.random.normal(jax.random.PRNGKey(2), (2, 256, 256), dtype=jnp.float32)
    xl_np = np.asarray(xl)
    yl = jax.block_until_ready(transform(xl, (250, 200)))
    np.testing.assert_allclose(np.asarray(yl), _reference_numpy(xl_np, (250, 200), 5),
                               rtol=0, atol=0)

    # bf16 path (sublane tile 16) with a window spanning two row tiles and
    # touching the left edge.
    xb = jax.random.normal(jax.random.PRNGKey(3), (3, 32, 32)).astype(jnp.bfloat16)
    yb = jax.block_until_ready(transform(xb, (16, 1)))
    ref_b = _reference_numpy(np.asarray(xb.astype(jnp.float32)), (16, 1), 5)
    np.testing.assert_allclose(np.asarray(yb.astype(jnp.float32)), ref_b,
                               rtol=0, atol=0)

    # Window entirely off-tensor -> no-op fast path.
    y_noop = jax.block_until_ready(transform(x, (40, 40)))
    np.testing.assert_allclose(np.asarray(y_noop), x_np, rtol=0, atol=0)

    print("KERNEL_OK")
</pallas_src>

<mosaic_0001>
module attributes {stable_mosaic.version = 11 : i64} {
  func.func @kernel(%arg0: i32, %arg1: i32, %arg2: i32, %arg3: memref<4x8x16xf32, #tpu.memory_space<vmem>>, %arg4: memref<4x8x16xf32, #tpu.memory_space<vmem>>) attributes {dimension_semantics = [#tpu.dimension_semantics<parallel>, #tpu.dimension_semantics<parallel>, #tpu.dimension_semantics<parallel>], iteration_bounds = array<i64: 1, 1, 1>, scalar_prefetch = 0 : i64, scratch_operands = 0 : i64, tpu.core_type = #tpu.core_type<tc>, window_params = [{transform_indices = @transform_0, window_bounds = array<i64: 4, 8, 16>}, {transform_indices = @transform_1, window_bounds = array<i64: 4, 8, 16>}]} {
    %c0_i32 = arith.constant 0 : i32
    %0 = arith.addi %c0_i32, %arg1 : i32
    %c8_i32 = arith.constant 8 : i32
    %1 = arith.muli %0, %c8_i32 : i32
    %c0_i32_0 = arith.constant 0 : i32
    %2 = arith.addi %c0_i32_0, %arg2 : i32
    %c16_i32 = arith.constant 16 : i32
    %3 = arith.muli %2, %c16_i32 : i32
    %4 = tpu.iota {dimensions = array<i32: 0>} : vector<8x16xi32>
    %5 = vector.broadcast %1 : i32 to vector<8x16xi32>
    %6 = arith.addi %5, %4 : vector<8x16xi32>
    %7 = tpu.iota {dimensions = array<i32: 1>} : vector<8x16xi32>
    %8 = vector.broadcast %3 : i32 to vector<8x16xi32>
    %9 = arith.addi %8, %7 : vector<8x16xi32>
    %c1_i32 = arith.constant 1 : i32
    %10 = vector.broadcast %c1_i32 : i32 to vector<8x16xi32>
    %11 = arith.subi %6, %10 : vector<8x16xi32>
    %c5_i32 = arith.constant 5 : i32
    %12 = vector.broadcast %c5_i32 : i32 to vector<8x16xi32>
    %13 = arith.cmpi ult, %11, %12 : vector<8x16xi32>
    %c12_i32 = arith.constant 12 : i32
    %14 = vector.broadcast %c12_i32 : i32 to vector<8x16xi32>
    %15 = arith.subi %9, %14 : vector<8x16xi32>
    %c4_i32 = arith.constant 4 : i32
    %16 = vector.broadcast %c4_i32 : i32 to vector<8x16xi32>
    %17 = arith.cmpi ult, %15, %16 : vector<8x16xi32>
    %18 = arith.andi %13, %17 : vector<8x16xi1>
    %19 = vector.shape_cast %18 : vector<8x16xi1> to vector<1x8x16xi1>
    %c0 = arith.constant 0 : index
    %c0_1 = arith.constant 0 : index
    %c0_2 = arith.constant 0 : index
    %20 = vector.load %arg3[%c0, %c0_1, %c0_2] : memref<4x8x16xf32, #tpu.memory_space<vmem>>, vector<4x8x16xf32>
    %cst = arith.constant 0.000000e+00 : f32
    %21 = vector.shape_cast %19 : vector<1x8x16xi1> to vector<1x8x16xi1>
    %22 = vector.broadcast %21 : vector<1x8x16xi1> to vector<4x8x16xi1>
    %23 = vector.broadcast %cst : f32 to vector<4x8x16xf32>
    %24 = arith.select %22, %23, %20 : vector<4x8x16xi1>, vector<4x8x16xf32>
    %c0_3 = arith.constant 0 : index
    %c0_4 = arith.constant 0 : index
    %c0_5 = arith.constant 0 : index
    %25 = vector.load %arg4[%c0_3, %c0_4, %c0_5] : memref<4x8x16xf32, #tpu.memory_space<vmem>>, vector<4x8x16xf32>
    tpu.vector_store %arg4[%c0_3, %c0_4, %c0_5], %24 {strides = array<i32>} : memref<4x8x16xf32, #tpu.memory_space<vmem>>, vector<4x8x16xf32>,
    return
  }
  func.func @transform_0(%arg0: i32, %arg1: i32, %arg2: i32) -> (i32, i32, i32) {
    %c0_i32 = arith.constant 0 : i32
    %0 = arith.addi %c0_i32, %arg1 : i32
    %c0_i32_0 = arith.constant 0 : i32
    %1 = arith.addi %c0_i32_0, %arg2 : i32
    %c0_i32_1 = arith.constant 0 : i32
    return %arg0, %0, %1 : i32, i32, i32
  }
  func.func @transform_1(%arg0: i32, %arg1: i32, %arg2: i32) -> (i32, i32, i32) {
    %c0_i32 = arith.constant 0 : i32
    %0 = arith.addi %c0_i32, %arg1 : i32
    %c0_i32_0 = arith.constant 0 : i32
    %1 = arith.addi %c0_i32_0, %arg2 : i32
    %c0_i32_1 = arith.constant 0 : i32
    return %arg0, %0, %1 : i32, i32, i32
  }
}

</mosaic_0001>

<llo_original>
// kernel: tpu_custom_call.1
$region0: #{tpu_custom_call.1}
  #allocation0 [shape = 'u32[]', space=smem, size = 0x4, offset = 0x4, fixed_abs, tag = 'smem constant byte address 0x4 - core index']
  #allocation1 [shape = 'u32[144,128]{1,0:T(1,128)}', space=vmem, size = 0x12000, scoped, tag = 'internal scratch']
  %s0 = inlined_call_operand.hbm [shape: f32[4,16,16], index: 0, kind: input, shape index: {}, may-alias: {0,1}]
  %s1 = inlined_call_operand.hbm [shape: f32[4,16,16], index: 1, kind: output, shape index: {}, may-alias: {0,1}]
  %s2 = sld [smem:[#allocation0]]
  $region18: #{tpu_custom_call.1} parent=0
    _
  %s4 = ssub.s32 1, %s2
  %s5 = scalar_select 0, %s4, %s2
  $region1: #{tpu_custom_call.1} parent=0
    #allocation2 [shape = 'u8[16384]{0}', space=vmem, size = 0x4000, scoped, tag = 'input window, operand 0, single buffered']
    #allocation3 [shape = 's32[1]{0}', space=sflag, size = 0x4, scoped, tag = 'scoped memory for tpu_custom_call.1']
    #allocation4 [shape = 's32[1]{0}', space=sflag, size = 0x4, scoped, tag = 'scoped memory for tpu_custom_call.1']
    #allocation5 [shape = 'u8[16384]{0}', space=vmem, size = 0x4000, scoped, tag = 'output window, operand 0, single buffered']
    %6 = vsyncpa [#allocation3], 0
    %7 = vsyncpa [#allocation4], 0
    // Predicated region
    $region2: #{tpu_custom_call.1} parent=1 // pred_check
      _
    $region3: #{tpu_custom_call.1} parent=1 // pred_check_branch
      %9 = sbr.rel (0) target = $region5
    $region4: #{tpu_custom_call.1} parent=1 // pred_region
      %s11 = ssub.s32 512, 512
      %12 = vsyncadd [#allocation3], %s11
      %s13 = sshll.u32 [#allocation2], 4
      %s14 = int_to_ptr.vmem [resolvable:$true] %s13
      %19 = dma.hbm_to_vmem [thread:$0]  %s0, 512, %s14, [#allocation3], 256, 128, 8
    $region5: #{tpu_custom_call.1} parent=1 // pred_fallthru
      _
    // Predicated region
    $region6: #{tpu_custom_call.1} parent=1 // pred_check
      _
    $region7: #{tpu_custom_call.1} parent=1 // pred_check_branch
      %21 = sbr.rel (0) target = $region9
    $region8: #{tpu_custom_call.1} parent=1 // pred_region
      %22 = dma.done [#allocation3], 512
    $region9: #{tpu_custom_call.1} parent=1 // pred_fallthru
      _
    %s23 = smul.u32 0, 8
    %s24 = smul.u32 0, 16
    %v25 = vlaneseq
    %v26 = vshrl.u32 %v25, 7
    %v27 = vstv %s23
    %v28 = vadd.s32 %v27, %v26
    %v29 = vlaneseq
    %v30 = vand.u32 %v29, 127
    %v31 = vstv %s24
    %v32 = vadd.s32 %v31, %v30
    %v33 = vsub.s32 %v28, 1
    %vm34 = vcmp.lt.u32.totalorder %v33, 5
    %v35 = vsub.s32 %v32, 12
    %vm36 = vcmp.lt.u32.totalorder %v35, 4
    %vm37 = vmand %vm34, %vm36
    %v38 = vld [vmem:[#allocation2] sm:$0xff]
    %v39 = vld [vmem:[#allocation2 + $0x8] sm:$0xff]
    %v40 = vld [vmem:[#allocation2 + $0x10] sm:$0xff]
    %v41 = vld [vmem:[#allocation2 + $0x18] sm:$0xff]
    %v42 = vsel %vm37, 1, 0
    %vm43 = vcmp.eq.s32.totalorder %v42, 1
    %v44 = vsel %vm43, 0.0, %v38
    %v45 = vsel %vm43, 0.0, %v39
    %v46 = vsel %vm43, 0.0, %v40
    %v47 = vsel %vm43, 0.0, %v41
    %vm48 = vcmask 130048
    %49 = vst.msk [vmem:[#allocation5] sm:$0xff] %vm48, %v44
    %50 = vst.msk [vmem:[#allocation5 + $0x8] sm:$0xff] %vm48, %v45
    %51 = vst.msk [vmem:[#allocation5 + $0x10] sm:$0xff] %vm48, %v46
    %52 = vst.msk [vmem:[#allocation5 + $0x18] sm:$0xff] %vm48, %v47
    // Predicated region
    $region10: #{tpu_custom_call.1} parent=1 // pred_check
      _
    $region11: #{tpu_custom_call.1} parent=1 // pred_check_branch
      %54 = sbr.rel (0) target = $region13
    $region12: #{tpu_custom_call.1} parent=1 // pred_region
      %s56 = ssub.s32 512, 512
      %57 = vsyncadd [#allocation4], %s56
      %s58 = sshll.u32 [#allocation5], 4
      %s59 = int_to_ptr.vmem [resolvable:$true] %s58
      %64 = dma.vmem_to_hbm [thread:$0]  %s59, 512, %s1, [#allocation4], 128, 256, 8
    $region13: #{tpu_custom_call.1} parent=1 // pred_fallthru
      _
    // Predicated region
    $region14: #{tpu_custom_call.1} parent=1 // pred_check
      _
    $region15: #{tpu_custom_call.1} parent=1 // pred_check_branch
      %66 = sbr.rel (0) target = $region17
    $region16: #{tpu_custom_call.1} parent=1 // pred_region
      %67 = dma.done [#allocation4], 512
    $region17: #{tpu_custom_call.1} parent=1 // pred_fallthru
      _
    %68 = vsyncpa [#allocation3], 1
    %69 = vsyncpa [#allocation4], 1

</llo_original>
